<compile_context>
chip_gen: v5e
topology: v5e:2x2
jax: 0.10.0
libtpu: 0.0.40
codegen_flags: <defaults>
</compile_context>

<pallas_src>
import functools

import jax
import jax.numpy as jnp
from jax.experimental import pallas as pl
from jax.experimental.pallas import tpu as pltpu


def _vq_kernel(x_ref, cbsq_ref, cbt_ref, cb_ref, q_ref, losspart_ref, *,
               n_valid, n_padded):
    tn = x_ref.shape[0]
    x_in = x_ref[...]                 # (TN, D) native dtype
    cbt = cbt_ref[...]                # (D, K)  native dtype (resident)
    cb = cb_ref[...]                  # (K, D)  native dtype (resident)
    k = cb.shape[0]
    cb_sq = cbsq_ref[...]             # (1, K)  f32 (resident, precomputed)

    # Distance scores.  ||x||^2 is a per-row constant and does not change the
    # argmin, so score = ||e||^2 - 2 x.e is sufficient.
    xe = jnp.dot(x_in, cbt, preferred_element_type=jnp.float32)      # (TN, K) MXU
    d2 = cb_sq - 2.0 * xe

    # argmin along K (first index among ties, matching torch.argmin).
    dmin = jnp.min(d2, axis=-1, keepdims=True)                       # (TN, 1)
    iota = jax.lax.broadcasted_iota(jnp.int32, d2.shape, 1)          # (TN, K)
    idx = jnp.min(jnp.where(d2 <= dmin, iota, k), axis=-1, keepdims=True)

    # Embedding lookup as a one-hot matmul (MXU-friendly gather); one-hot built
    # in the codebook's dtype so the matmul stays in the fast input format.
    onehot = (iota == idx).astype(cb.dtype)                          # (TN, K)
    quant = jnp.dot(onehot, cb, preferred_element_type=jnp.float32)  # (TN, D)
    q_ref[...] = quant.astype(q_ref.dtype)

    # Per-tile partial sum of squared errors.
    diff = quant - x_in.astype(jnp.float32)
    losspart_ref[...] = jnp.broadcast_to(jnp.sum(diff * diff), losspart_ref.shape)

    if n_valid != n_padded:
        # Only the final tile contains pad rows; all other tiles skip the mask.
        rows_last = n_valid - (n_padded - tn)      # static Python int

        @pl.when(pl.program_id(0) == pl.num_programs(0) - 1)
        def _():
            row = jax.lax.broadcasted_iota(jnp.int32, (tn, 1), 0)
            dm = jnp.where(row < rows_last, diff, 0.0)
            losspart_ref[...] = jnp.broadcast_to(jnp.sum(dm * dm),
                                                 losspart_ref.shape)


def _round_up(a, b):
    return (a + b - 1) // b * b


def _cdiv(a, b):
    return -(-a // b)


def vector_quantize(x, codebook, commitment_cost=0.25, *, tile_n=None,
                    vmem_budget=None):
    """x: (B, S, D), codebook: (K, D) -> (quantized (B, S, D), scalar loss)."""
    b, s, d = x.shape
    k, d_cb = codebook.shape
    assert d == d_cb
    n = b * s

    x_item = jnp.dtype(x.dtype).itemsize
    cb_item = jnp.dtype(codebook.dtype).itemsize
    # dtype-aware sublane alignment (f32 -> 8 rows, bf16 -> 16 rows, ...)
    sub = 8 * max(1, 4 // x_item)

    # Generation-aware VMEM budget: ~half of physical minus headroom, capped.
    try:
        vmem_cap = int(pltpu.get_tpu_info().vmem_capacity_bytes)
    except Exception:
        vmem_cap = 64 << 20                        # conservative (v7x per-core)
    vmem_cap = max(vmem_cap, 64 << 20)
    if vmem_budget is None:
        vmem_budget = min(max(vmem_cap // 2 - (8 << 20), 16 << 20), 48 << 20)

    # Per-tile VMEM footprint: double-buffered x-in / q-out blocks, resident
    # codebook views (counted double-buffered to be safe), and the f32
    # temporaries the kernel materializes ((TN,K) scores/iota/one-hot and
    # (TN,D) quant/diff copies).
    def _tile_bytes(t):
        io = 2 * 2 * t * d * x_item
        resident = 2 * (2 * k * d * cb_item + 4 * k)
        temps = 3 * 4 * t * k + 3 * 4 * t * d
        return io + resident + temps + 2 * 4 * 128

    max_rows = tile_n if tile_n is not None else 8192
    tn = max(sub, _round_up(min(max_rows, n), sub))
    while tn > sub and _tile_bytes(tn) > vmem_budget:
        tn = max(sub, _round_up(tn // 2, sub))

    num_tiles = _cdiv(n, tn)
    if num_tiles > 1 and num_tiles % 2 == 1:
        # Prefer an even tile count: the "parallel" axis then splits evenly
        # across the two TensorCores on v7x.
        t2 = max(sub, _round_up(_cdiv(n, num_tiles + 1), sub))
        if _cdiv(n, t2) % 2 == 0 and _tile_bytes(t2) <= vmem_budget:
            tn = t2
            num_tiles = _cdiv(n, tn)
    n_pad = num_tiles * tn

    flat_x = x.reshape(n, d)
    if n_pad != n:
        flat_x = jnp.pad(flat_x, ((0, n_pad - n), (0, 0)))

    # Hoisted codebook-invariant work: ||e||^2 as a lane-major (1, K) f32 row
    # and a pre-transposed (D, K) copy for the distance matmul (no per-step
    # relayout of a resident operand inside the kernel).
    cb_f32 = codebook.astype(jnp.float32)
    cb_sq = jnp.sum(cb_f32 * cb_f32, axis=-1, keepdims=True).T       # (1, K)
    cb_t = jnp.swapaxes(codebook, 0, 1)                              # (D, K)

    kernel = functools.partial(_vq_kernel, n_valid=n, n_padded=n_pad)

    cost = pl.CostEstimate(
        flops=int(4 * n_pad * k * d),           # distance + one-hot gather matmuls
        transcendentals=0,
        bytes_accessed=int(2 * n_pad * d * x_item          # x in + q out
                           + 2 * k * d * cb_item + 4 * k   # cb, cb_t, cb_sq
                           + 4 * num_tiles * 128),          # loss partials
    )

    vmem_limit = int(min(max(_tile_bytes(tn) + (8 << 20), 16 << 20),
                         vmem_cap - (16 << 20)))

    quant_flat, loss_part = pl.pallas_call(
        kernel,
        out_shape=(
            jax.ShapeDtypeStruct((n_pad, d), x.dtype),
            jax.ShapeDtypeStruct((num_tiles, 1, 128), jnp.float32),
        ),
        grid_spec=pltpu.PrefetchScalarGridSpec(
            num_scalar_prefetch=0,
            grid=(num_tiles,),
            in_specs=[
                pl.BlockSpec((tn, d), lambda i: (i, 0)),        # x tile
                pl.BlockSpec((1, k), lambda i: (0, 0)),         # ||e||^2 (resident)
                pl.BlockSpec((d, k), lambda i: (0, 0)),         # codebook^T (resident)
                pl.BlockSpec((k, d), lambda i: (0, 0)),         # codebook (resident)
            ],
            out_specs=[
                pl.BlockSpec((tn, d), lambda i: (i, 0)),        # quantized tile
                pl.BlockSpec((1, 1, 128), lambda i: (i, 0, 0)),  # per-tile SSE
            ],
        ),
        compiler_params=pltpu.CompilerParams(
            dimension_semantics=("parallel",),                  # shardable across TCs
            vmem_limit_bytes=vmem_limit,
        ),
        cost_estimate=cost,
    )(flat_x, cb_sq, cb_t, codebook)

    loss = jnp.sum(loss_part[:, 0, 0]) * ((1.0 + commitment_cost) / (n * d))
    return quant_flat[:n].reshape(b, s, d), loss


def vector_quantize_ref(x, codebook, commitment_cost=0.25):
    """Pure-JAX reference matching the PyTorch forward."""
    b, s, d = x.shape
    flat_x = x.reshape(b * s, d)
    d2 = (
        jnp.sum(flat_x**2, axis=1, keepdims=True)
        - 2.0 * flat_x @ codebook.T
        + jnp.sum(codebook**2, axis=1)[None, :]
    )
    idx = jnp.argmin(d2, axis=1)
    quant = codebook[idx].reshape(b, s, d)
    mse = jnp.mean((quant - x) ** 2)
    loss = mse + commitment_cost * mse
    return quant, loss


if __name__ == "__main__":
    # Small shapes consistent with the module: batch=2, seq=8, embedding_dim=32,
    # num_embeddings=64.
    B, S, D = 2, 8, 32
    K = 64
    commitment_cost = 0.25

    key = jax.random.PRNGKey(0)
    kx, kc = jax.random.split(key)
    x = jax.random.normal(kx, (B, S, D), dtype=jnp.float32)
    # nn.init.uniform_(embedding.weight, -0.1, 0.1), deterministic in-script.
    codebook = jax.random.uniform(kc, (K, D), dtype=jnp.float32, minval=-0.1, maxval=0.1)

    quantized, loss = vector_quantize(x, codebook, commitment_cost)
    jax.block_until_ready((quantized, loss))

    q_ref, loss_ref = vector_quantize_ref(x, codebook, commitment_cost)
    assert jnp.allclose(quantized, q_ref, atol=1e-5), "quantized mismatch"
    assert jnp.allclose(loss, loss_ref, atol=1e-5), "loss mismatch"

    # Also exercise a ragged / multi-tile configuration (padding + pl.when
    # last-tile mask path).
    x2 = jax.random.normal(kx, (3, 13, D), dtype=jnp.float32)
    q2, l2 = vector_quantize(x2, codebook, commitment_cost, tile_n=16)
    jax.block_until_ready((q2, l2))
    q2r, l2r = vector_quantize_ref(x2, codebook, commitment_cost)
    assert jnp.allclose(q2, q2r, atol=1e-5), "ragged quantized mismatch"
    assert jnp.allclose(l2, l2r, atol=1e-5), "ragged loss mismatch"

    print("KERNEL_OK")
</pallas_src>

<mosaic_0001>
module attributes {stable_mosaic.version = 11 : i64} {
  func.func @_vq_kernel(%arg0: i32, %arg1: memref<16x32xf32, #tpu.memory_space<vmem>>, %arg2: memref<1x64xf32, #tpu.memory_space<vmem>>, %arg3: memref<32x64xf32, #tpu.memory_space<vmem>>, %arg4: memref<64x32xf32, #tpu.memory_space<vmem>>, %arg5: memref<16x32xf32, #tpu.memory_space<vmem>>, %arg6: memref<1x1x128xf32, #tpu.memory_space<vmem>>) attributes {dimension_semantics = [#tpu.dimension_semantics<parallel>], iteration_bounds = array<i64: 1>, scalar_prefetch = 0 : i64, scratch_operands = 0 : i64, tpu.core_type = #tpu.core_type<tc>, window_params = [{transform_indices = @transform_0, window_bounds = array<i64: 16, 32>}, {pipeline_mode = #tpu.pipeline_mode<synchronous>, transform_indices = @transform_1, window_bounds = array<i64: 1, 64>}, {pipeline_mode = #tpu.pipeline_mode<synchronous>, transform_indices = @transform_2, window_bounds = array<i64: 32, 64>}, {pipeline_mode = #tpu.pipeline_mode<synchronous>, transform_indices = @transform_3, window_bounds = array<i64: 64, 32>}, {transform_indices = @transform_4, window_bounds = array<i64: 16, 32>}, {transform_indices = @transform_5, window_bounds = array<i64: 1, 1, 128>}]} {
    %c0 = arith.constant 0 : index
    %c0_0 = arith.constant 0 : index
    %0 = vector.load %arg1[%c0, %c0_0] : memref<16x32xf32, #tpu.memory_space<vmem>>, vector<16x32xf32>
    %c0_1 = arith.constant 0 : index
    %c0_2 = arith.constant 0 : index
    %1 = vector.load %arg3[%c0_1, %c0_2] : memref<32x64xf32, #tpu.memory_space<vmem>>, vector<32x64xf32>
    %c0_3 = arith.constant 0 : index
    %c0_4 = arith.constant 0 : index
    %2 = vector.load %arg4[%c0_3, %c0_4] : memref<64x32xf32, #tpu.memory_space<vmem>>, vector<64x32xf32>
    %c0_5 = arith.constant 0 : index
    %c0_6 = arith.constant 0 : index
    %3 = vector.load %arg2[%c0_5, %c0_6] : memref<1x64xf32, #tpu.memory_space<vmem>>, vector<1x64xf32>
    %cst = arith.constant dense<0.000000e+00> : vector<16x64xf32>
    %4 = tpu.matmul %0, %1, %cst {dimension_numbers = #tpu.dot_dimension_numbers<[1], [0], [0], [1], [0, 0, 1, 1], [], []>} : vector<16x32xf32>, vector<32x64xf32>, vector<16x64xf32> -> vector<16x64xf32>
    %cst_7 = arith.constant 2.000000e+00 : f32
    %5 = vector.broadcast %cst_7 : f32 to vector<16x64xf32>
    %6 = arith.mulf %5, %4 : vector<16x64xf32>
    %7 = vector.broadcast %3 : vector<1x64xf32> to vector<16x64xf32>
    %8 = arith.subf %7, %6 : vector<16x64xf32>
    %cst_8 = arith.constant dense<0x7F800000> : vector<16xf32>
    %9 = vector.multi_reduction <minimumf>, %8, %cst_8 [1] : vector<16x64xf32> to vector<16xf32>
    %10 = vector.shape_cast %9 : vector<16xf32> to vector<16x1xf32>
    %11 = tpu.iota {dimensions = array<i32: 1>} : vector<16x64xi32>
    %12 = vector.broadcast %10 : vector<16x1xf32> to vector<16x64xf32>
    %13 = arith.cmpf ole, %8, %12 : vector<16x64xf32>
    %c64_i32 = arith.constant 64 : i32
    %14 = vector.broadcast %c64_i32 : i32 to vector<16x64xi32>
    %15 = arith.select %13, %11, %14 : vector<16x64xi1>, vector<16x64xi32>
    %cst_9 = arith.constant dense<2147483647> : vector<16xi32>
    %16 = vector.multi_reduction <minsi>, %15, %cst_9 [1] : vector<16x64xi32> to vector<16xi32>
    %17 = vector.shape_cast %16 : vector<16xi32> to vector<16x1xi32>
    %18 = vector.broadcast %17 : vector<16x1xi32> to vector<16x64xi32>
    %19 = arith.cmpi eq, %11, %18 : vector<16x64xi32>
    %20 = arith.extui %19 : vector<16x64xi1> to vector<16x64xi32>
    %21 = arith.sitofp %20 : vector<16x64xi32> to vector<16x64xf32>
    %cst_10 = arith.constant dense<0.000000e+00> : vector<16x32xf32>
    %22 = tpu.matmul %21, %2, %cst_10 {dimension_numbers = #tpu.dot_dimension_numbers<[1], [0], [0], [1], [0, 0, 1, 1], [], []>} : vector<16x64xf32>, vector<64x32xf32>, vector<16x32xf32> -> vector<16x32xf32>
    %c0_11 = arith.constant 0 : index
    %c0_12 = arith.constant 0 : index
    %23 = vector.load %arg5[%c0_11, %c0_12] : memref<16x32xf32, #tpu.memory_space<vmem>>, vector<16x32xf32>
    tpu.vector_store %arg5[%c0_11, %c0_12], %22 {strides = array<i32>} : memref<16x32xf32, #tpu.memory_space<vmem>>, vector<16x32xf32>,
    %24 = arith.subf %22, %0 : vector<16x32xf32>
    %25 = arith.mulf %24, %24 : vector<16x32xf32>
    %26 = vector.shape_cast %25 : vector<16x32xf32> to vector<1x16x32xf32>
    %cst_13 = arith.constant dense<0.000000e+00> : vector<1xf32>
    %27 = vector.multi_reduction <add>, %26, %cst_13 [1, 2] : vector<1x16x32xf32> to vector<1xf32>
    %28 = vector.shape_cast %27 : vector<1xf32> to vector<1x1x1xf32>
    %29 = vector.extract %28[0, 0, 0] : f32 from vector<1x1x1xf32>
    %30 = vector.broadcast %29 : f32 to vector<1x1x128xf32>
    %c0_14 = arith.constant 0 : index
    %c0_15 = arith.constant 0 : index
    %c0_16 = arith.constant 0 : index
    %31 = vector.load %arg6[%c0_14, %c0_15, %c0_16] : memref<1x1x128xf32, #tpu.memory_space<vmem>>, vector<1x1x128xf32>
    tpu.vector_store %arg6[%c0_14, %c0_15, %c0_16], %30 {strides = array<i32>} : memref<1x1x128xf32, #tpu.memory_space<vmem>>, vector<1x1x128xf32>,
    return
  }
  func.func @transform_0(%arg0: i32) -> (i32, i32) {
    %c0_i32 = arith.constant 0 : i32
    %c0_i32_0 = arith.constant 0 : i32
    return %arg0, %c0_i32 : i32, i32
  }
  func.func @transform_1(%arg0: i32) -> (i32, i32) {
    %c0_i32 = arith.constant 0 : i32
    %c0_i32_0 = arith.constant 0 : i32
    %c0_i32_1 = arith.constant 0 : i32
    return %c0_i32, %c0_i32_0 : i32, i32
  }
  func.func @transform_2(%arg0: i32) -> (i32, i32) {
    %c0_i32 = arith.constant 0 : i32
    %c0_i32_0 = arith.constant 0 : i32
    %c0_i32_1 = arith.constant 0 : i32
    return %c0_i32, %c0_i32_0 : i32, i32
  }
  func.func @transform_3(%arg0: i32) -> (i32, i32) {
    %c0_i32 = arith.constant 0 : i32
    %c0_i32_0 = arith.constant 0 : i32
    %c0_i32_1 = arith.constant 0 : i32
    return %c0_i32, %c0_i32_0 : i32, i32
  }
  func.func @transform_4(%arg0: i32) -> (i32, i32) {
    %c0_i32 = arith.constant 0 : i32
    %c0_i32_0 = arith.constant 0 : i32
    return %arg0, %c0_i32 : i32, i32
  }
  func.func @transform_5(%arg0: i32) -> (i32, i32, i32) {
    %c0_i32 = arith.constant 0 : i32
    %c0_i32_0 = arith.constant 0 : i32
    %c0_i32_1 = arith.constant 0 : i32
    return %arg0, %c0_i32, %c0_i32_0 : i32, i32, i32
  }
}

</mosaic_0001>

<llo_original>
// kernel: tpu_custom_call.1
$region0: #{tpu_custom_call.1}
  #allocation0 [shape = 'u32[]', space=smem, size = 0x4, offset = 0x4, fixed_abs, tag = 'smem constant byte address 0x4 - core index']
  #allocation1 [shape = 'u32[72,128]{1,0:T(1,128)}', space=vmem, size = 0x9000, scoped, tag = 'internal scratch']
  %s0 = inlined_call_operand.vmem [shape: f32[16,32], index: 0, kind: input, shape index: {}]
  %s1 = inlined_call_operand.vmem [shape: f32[1,64], index: 1, kind: input, shape index: {}]
  %s2 = inlined_call_operand.vmem [shape: f32[32,64], index: 2, kind: input, shape index: {}]
  %s3 = inlined_call_operand.vmem [shape: f32[64,32], index: 3, kind: input, shape index: {}]
  %s4 = inlined_call_operand.hbm [shape: f32[16,32], index: 4, kind: output, shape index: {0}]
  %s5 = inlined_call_operand.hbm [shape: f32[1,1,128], index: 5, kind: output, shape index: {1}]
  %6 = xla_tuple %s4, %s5
  %s7 = sld [smem:[#allocation0]]
  $region34: #{tpu_custom_call.1} parent=0
    _
  %s9 = ssub.s32 1, %s7
  %s10 = scalar_select 0, %s9, %s7
  $region1: #{tpu_custom_call.1} parent=0
    #allocation2 [shape = 'u8[8192]{0}', space=vmem, size = 0x2000, scoped, tag = 'output window, operand 0, single buffered']
    #allocation3 [shape = 's32[1]{0}', space=sflag, size = 0x4, scoped, tag = 'scoped memory for tpu_custom_call.1']
    #allocation4 [shape = 'u8[512]{0}', space=vmem, size = 0x400, scoped, tag = 'output window, operand 1, single buffered']
    #allocation5 [shape = 's32[1]{0}', space=sflag, size = 0x4, scoped, tag = 'scoped memory for tpu_custom_call.1']
    %11 = vsyncpa [#allocation3], 0
    %12 = vsyncpa [#allocation5], 0
    // Predicated region
    $region2: #{tpu_custom_call.1} parent=1 // pred_check
      _
    $region3: #{tpu_custom_call.1} parent=1 // pred_check_branch
      %14 = sbr.rel (0) target = $region5
    $region4: #{tpu_custom_call.1} parent=1 // pred_region
      _
    $region5: #{tpu_custom_call.1} parent=1 // pred_fallthru
      _
    // Predicated region
    $region6: #{tpu_custom_call.1} parent=1 // pred_check
      _
    $region7: #{tpu_custom_call.1} parent=1 // pred_check_branch
      %16 = sbr.rel (0) target = $region9
    $region8: #{tpu_custom_call.1} parent=1 // pred_region
      _
    $region9: #{tpu_custom_call.1} parent=1 // pred_fallthru
      _
    // Predicated region
    $region10: #{tpu_custom_call.1} parent=1 // pred_check
      _
    $region11: #{tpu_custom_call.1} parent=1 // pred_check_branch
      %18 = sbr.rel (0) target = $region13
    $region12: #{tpu_custom_call.1} parent=1 // pred_region
      _
    $region13: #{tpu_custom_call.1} parent=1 // pred_fallthru
      _
    // Predicated region
    $region14: #{tpu_custom_call.1} parent=1 // pred_check
      _
    $region15: #{tpu_custom_call.1} parent=1 // pred_check_branch
      %20 = sbr.rel (0) target = $region17
    $region16: #{tpu_custom_call.1} parent=1 // pred_region
      _
    $region17: #{tpu_custom_call.1} parent=1 // pred_fallthru
      _
    %v21 = vld [vmem:[%s0] sm:$0xff]
    %v22 = vld [vmem:[%s0 + $0x8] sm:$0xff]
    %v23 = vld [vmem:[%s2] sm:$0xff]
    %v24 = vld [vmem:[%s2 + $0x8] sm:$0xff]
    %v25 = vld [vmem:[%s2 + $0x10] sm:$0xff]
    %v26 = vld [vmem:[%s2 + $0x18] sm:$0xff]
    %v27 = vld [vmem:[%s3] sm:$0xff]
    %v28 = vld [vmem:[%s3 + $0x8] sm:$0xff]
    %v29 = vld [vmem:[%s3 + $0x10] sm:$0xff]
    %v30 = vld [vmem:[%s3 + $0x18] sm:$0xff]
    %v31 = vld [vmem:[%s3 + $0x20] sm:$0xff]
    %v32 = vld [vmem:[%s3 + $0x28] sm:$0xff]
    %v33 = vld [vmem:[%s3 + $0x30] sm:$0xff]
    %v34 = vld [vmem:[%s3 + $0x38] sm:$0xff]
    %v35 = vld [vmem:[%s1] sm:$0x1]
    %vm36 = vcmask 261120
    %v38 = vsel %vm36, %v21, 0
    %v41 = vsel %vm36, %v22, 0
    %43 = vmatpush.msra.mxu0 0.0
    %44 = vmatpush.msra.mxu0 0.0
    %45 = vmatpush.msra.mxu0 0.0
    %46 = vmatpush.msra.mxu0 0.0
    %47 = vmatpush.msra.mxu0 0.0
    %48 = vmatpush.msra.mxu0 0.0
    %49 = vmatpush.msra.mxu0 0.0
    %50 = vmatpush.msra.mxu0 0.0
    %51 = vmatpush.msra.mxu0 0.0
    %52 = vmatpush.msra.mxu0 0.0
    %53 = vmatpush.msra.mxu0 0.0
    %54 = vmatpush.msra.mxu0 0.0
    %55 = vmatpush.msra.mxu0 %v26
    %56 = vmatpush.msra.mxu0 %v25
    %57 = vmatpush.msra.mxu0 %v24
    %58 = vmatpush.msra.mxu0 %v23
    %59 = vmatmul.f32.gmra.mxu0 %v38
    %v60 = vpop.f32.mrf.mxu0
    %v61 = vadd.f32 0.0, %v60
    %62 = vmatmul.f32.gmra.mxu0 %v41
    %v63 = vpop.f32.mrf.mxu0
    %v64 = vadd.f32 0.0, %v63
    %65 = vdwg.mxu0
    %v66 = vmul.f32 %v61, 2.0
    %v67 = vmul.f32 %v64, 2.0
    %v69 = vperm.slane %v35, 0
    %v71 = vsub.f32 %v69, %v66
    %v72 = vsub.f32 %v69, %v67
    %vm73 = vcmask 523264
    %v74 = vsel %vm73, %v71, inf
    %75 = vmin.xlane.f32.xlu0 %v74
    %v76 = vpop.xlane.xlu0 %75
    %v77 = vsel %vm73, %v72, inf
    %78 = vmin.xlane.f32.xlu0 %v77
    %v79 = vpop.xlane.xlu0 %78
    %v80 = vlaneseq
    %v81 = vand.u32 %v80, 127
    %vm82 = vcmp.le.f32.partialorder %v71, %v76
    %vm83 = vcmp.le.f32.partialorder %v72, %v79
    %v84 = vsel %vm82, %v81, 64
    %v85 = vsel %vm83, %v81, 64
    %v86 = vsel %vm73, %v84, 2147483647
    %v87 = vand.u32 %v86, 65535
    %v88 = vshra.s32 %v86, 16
    %v89 = vcvt.s32.f32 %v87
    %v90 = vcvt.s32.f32 %v88
    %91 = vmin.xlane.f32.xlu0 %v90
    %v92 = vpop.xlane.xlu0 %91
    %vm93 = vcmp.eq.f32.partialorder %v90, %v92
    %v94 = vsel %vm93, %v89, inf
    %95 = vmin.xlane.f32.xlu0 %v94
    %v96 = vpop.xlane.xlu0 %95
    %v97 = vcvt.f32.s32 %v96
    %v98 = vcvt.f32.s32 %v92
    %v99 = vshll.u32 %v98, 16
    %v100 = vadd.s32 %v99, %v97
    %v101 = vsel %vm73, %v85, 2147483647
    %v102 = vand.u32 %v101, 65535
    %v103 = vshra.s32 %v101, 16
    %v104 = vcvt.s32.f32 %v102
    %v105 = vcvt.s32.f32 %v103
    %106 = vmin.xlane.f32.xlu0 %v105
    %v107 = vpop.xlane.xlu0 %106
    %vm108 = vcmp.eq.f32.partialorder %v105, %v107
    %v109 = vsel %vm108, %v104, inf
    %110 = vmin.xlane.f32.xlu0 %v109
    %v111 = vpop.xlane.xlu0 %110
    %v112 = vcvt.f32.s32 %v111
    %v113 = vcvt.f32.s32 %v107
    %v114 = vshll.u32 %v113, 16
    %v115 = vadd.s32 %v114, %v112
    %vm116 = vcmp.eq.s32.totalorder %v81, %v100
    %vm117 = vcmp.eq.s32.totalorder %v81, %v115
    %v118 = vsel %vm116, 1, 0
    %v119 = vsel %vm117, 1, 0
    %v120 = vcvt.s32.f32 %v118
    %v121 = vcvt.s32.f32 %v119
    %v123 = vsel %vm73, %v120, 0
    %v126 = vsel %vm73, %v121, 0
    %128 = vmatpush.msra.mxu0 0.0
    %129 = vmatpush.msra.mxu0 0.0
    %130 = vmatpush.msra.mxu0 0.0
    %131 = vmatpush.msra.mxu0 0.0
    %132 = vmatpush.msra.mxu0 0.0
    %133 = vmatpush.msra.mxu0 0.0
    %134 = vmatpush.msra.mxu0 0.0
    %135 = vmatpush.msra.mxu0 0.0
    %136 = vmatpush.msra.mxu0 %v34
    %137 = vmatpush.msra.mxu0 %v33
    %138 = vmatpush.msra.mxu0 %v32
    %139 = vmatpush.msra.mxu0 %v31
    %140 = vmatpush.msra.mxu0 %v30
    %141 = vmatpush.msra.mxu0 %v29
    %142 = vmatpush.msra.mxu0 %v28
    %143 = vmatpush.msra.mxu0 %v27
    %144 = vmatmul.f32.gmra.mxu0 %v123
    %v145 = vpop.f32.mrf.mxu0
    %v146 = vadd.f32 0.0, %v145
    %147 = vmatmul.f32.gmra.mxu0 %v126
    %v148 = vpop.f32.mrf.mxu0
    %v149 = vadd.f32 0.0, %v148
    %150 = vdwg.mxu0
    %151 = vst.msk [vmem:[#allocation2] sm:$0xff] %vm36, %v146
    %152 = vst.msk [vmem:[#allocation2 + $0x8] sm:$0xff] %vm36, %v149
    %v153 = vsub.f32 %v146, %v21
    %v154 = vsub.f32 %v149, %v22
    %v155 = vmul.f32 %v153, %v153
    %v156 = vmul.f32 %v154, %v154
    %v157 = vsel %vm36, %v155, 0.0
    %v158 = vsel %vm36, %v156, 0.0
    %v159 = vadd.f32 %v157, %v158
    %160 = vadd.xlane.f32.xlu0 %v159
    %v161 = vpop.xlane.xlu0 %160
    %v162 = vrot.slane %v161, 4
    %v163 = vadd.f32 %v161, %v162
    %v164 = vrot.slane %v163, 2
    %v165 = vadd.f32 %v163, %v164
    %v166 = vrot.slane %v165, 1
    %v167 = vadd.f32 %v165, %v166
    %s168 = vtos %v167
    %v169 = vstv %s168
    %170 = vst [vmem:[#allocation4] sm:$0x1] %v169
    // Predicated region
    $region18: #{tpu_custom_call.1} parent=1 // pred_check
      _
    $region19: #{tpu_custom_call.1} parent=1 // pred_check_branch
      %172 = sbr.rel (0) target = $region21
    $region20: #{tpu_custom_call.1} parent=1 // pred_region
      %174 = vsyncadd [#allocation3], 0
      %s175 = sshll.u32 [#allocation2], 4
      %s176 = int_to_ptr.vmem [resolvable:$true] %s175
      %s177 = sshll.u32 %s4, 4
      %s178 = int_to_ptr.hbm [resolvable:$true] %s177
      %183 = dma.vmem_to_hbm [thread:$0]  %s176, 256, %s178, [#allocation3], 128, 128, 8
    $region21: #{tpu_custom_call.1} parent=1 // pred_fallthru
      _
    // Predicated region
    $region22: #{tpu_custom_call.1} parent=1 // pred_check
      _
    $region23: #{tpu_custom_call.1} parent=1 // pred_check_branch
      %185 = sbr.rel (0) target = $region25
    $region24: #{tpu_custom_call.1} parent=1 // pred_region
      %187 = vsyncadd [#allocation5], 0
      %s189 = sshll.u32 [#allocation4], 4
      %s190 = int_to_ptr.vmem [resolvable:$true] %s189
      %s191 = sshll.u32 %s5, 4
      %s192 = int_to_ptr.hbm [resolvable:$true] %s191
      %194 = dma.vmem_to_hbm [thread:$0]  %s190, 16, %s192, [#allocation5]
    $region25: #{tpu_custom_call.1} parent=1 // pred_fallthru
      _
    // Predicated region
    $region26: #{tpu_custom_call.1} parent=1 // pred_check
      _
    $region27: #{tpu_custom_call.1} parent=1 // pred_check_branch
      %196 = sbr.rel (0) target = $region29
    $region28: #{tpu_custom_call.1} parent=1 // pred_region
      %198 = dma.done [#allocation3], 256
    $region29: #{tpu_custom_call.1} parent=1 // pred_fallthru
      _
    // Predicated region
    $region30: #{tpu_custom_call.1} parent=1 // pred_check
      _
    $region31: #{tpu_custom_call.1} parent=1 // pred_check_branch
      %200 = sbr.rel (0) target = $region33
    $region32: #{tpu_custom_call.1} parent=1 // pred_region
      %202 = dma.done [#allocation5], 16
    $region33: #{tpu_custom_call.1} parent=1 // pred_fallthru
      _
    %203 = vsyncpa [#allocation3], 1
    %204 = vsyncpa [#allocation5], 1

</llo_original>
